<compile_context>
chip_gen: v7x
topology: tpu7x:2x2x1
jax: 0.10.0
libtpu: 0.0.40
codegen_flags: <defaults>
</compile_context>

<pallas_src>
import functools

import jax
import jax.numpy as jnp
from jax.experimental import pallas as pl
from jax.experimental.pallas import tpu as pltpu


def _deconv_kernel(x_ref, w_ref, b_ref, o_ref):
    """One (batch, M-tile): o[N, TM] = w[N, K] @ x[K, TM] + b[N, 1].

    x_ref: (K, TM)   activations, lane axis = flattened pixels
    w_ref: (N, K)    N = Cout*4 rows ordered (co, kh, kw); grid-invariant
    b_ref: (N, 1)    per-sublane bias constant; grid-invariant
    o_ref: (N, TM)   lane-dense output tile
    """
    K = x_ref.shape[0]
    x = x_ref[...]
    w = w_ref[...]
    if K <= 32:
        # Tiny contraction: unrolled rank-1 VPU FMAs. The MXU would run at a
        # few percent utilization with K this small, and the op is HBM-bound,
        # so VALU work is free filler and we avoid MXU push/pop latency.
        acc = w[:, 0:1] * x[0:1, :]
        for ci in range(1, K):
            acc = acc + w[:, ci:ci + 1] * x[ci:ci + 1, :]
    else:
        acc = jnp.dot(w, x, preferred_element_type=jnp.float32)
    o_ref[...] = (acc + b_ref[...]).astype(o_ref.dtype)


def _pick_tile(hw, k, n, tm_max, vmem_budget=24 << 20):
    """Largest lane tile that is (multiple of 128 or == HW) and fits VMEM."""
    if hw % 128 != 0:
        return hw  # block dim == full array dim is always allowed
    tm = min(tm_max, hw)  # both are multiples of 128
    # Double-buffered x + out blocks (w, b are tiny and resident).
    while tm > 128 and 2 * 4 * tm * (k + n) + 4 * (n * k + n) > vmem_budget:
        tm //= 2
    return tm


@functools.partial(jax.jit, static_argnames=("tm_max",))
def upsampling_block(x, weight, bias, *, tm_max=2048):
    """ConvTranspose2d(in_ch, out_ch, kernel_size=2, stride=2, padding=0).

    x:      (B, Cin, H, W)    float32, NCHW (PyTorch convention)
    weight: (Cin, Cout, 2, 2) float32 (PyTorch ConvTranspose2d layout)
    bias:   (Cout,)           float32
    returns (B, Cout, 2H, 2W) float32
    """
    B, Cin, H, W = x.shape
    Cout = weight.shape[1]
    HW = H * W
    N = Cout * 4

    # ---- glue (all cheap): no activation transpose, no activation pad ----
    x3 = x.reshape(B, Cin, HW)              # free reshape (contiguous collapse)
    w_t = weight.reshape(Cin, N).T          # (N, K); row n = co*4 + kh*2 + kw (tiny)
    b2 = jnp.repeat(bias, 4).reshape(N, 1)  # (N, 1), per-sublane constant

    tm = _pick_tile(HW, Cin, N, tm_max)
    n_tiles = pl.cdiv(HW, tm)               # ragged last block handled by Pallas

    out_t = pl.pallas_call(
        _deconv_kernel,
        out_shape=jax.ShapeDtypeStruct((B, N, HW), x.dtype),
        grid_spec=pltpu.PrefetchScalarGridSpec(
            num_scalar_prefetch=0,
            grid=(B, n_tiles),
            in_specs=[
                pl.BlockSpec((None, Cin, tm), lambda b, i: (b, 0, i)),
                pl.BlockSpec((N, Cin), lambda b, i: (0, 0)),   # resident
                pl.BlockSpec((N, 1), lambda b, i: (0, 0)),     # resident
            ],
            out_specs=pl.BlockSpec((None, N, tm), lambda b, i: (b, 0, i)),
        ),
        compiler_params=pltpu.CompilerParams(
            # Both axes independent -> v7x shards across its 2 TensorCores;
            # no-op on v5e/v6e.
            dimension_semantics=("parallel", "parallel"),
            # 32 MiB: raises v5e's 16 MiB default, matches v6e/v7x default,
            # stays under v7x's 64 MiB physical VMEM.
            vmem_limit_bytes=32 * 1024 * 1024,
        ),
    )(x3, w_t, b2)

    # ---- pixel shuffle back to NCHW: (B, Cout*2*2, H*W) -> (B, Cout, 2H, 2W) ----
    # TODO(synk): if this block feeds another layer, fuse this shuffle into the
    # consumer (or run NHWC end-to-end) to save one full HBM pass on the output.
    out = out_t.reshape(B, Cout, 2, 2, H, W)
    out = jnp.transpose(out, (0, 1, 4, 2, 5, 3))   # (B, Cout, H, 2, W, 2)
    return out.reshape(B, Cout, 2 * H, 2 * W)


def _reference(x, weight, bias):
    # Pure-JAX reference of ConvTranspose2d(k=2, s=2, p=0).
    B, Cin, H, W = x.shape
    Cout = weight.shape[1]
    y = jnp.einsum("bchw,cokl->bohkwl", x, weight)
    y = y.reshape(B, Cout, 2 * H, 2 * W)
    return y + bias[None, :, None, None]


if __name__ == "__main__":
    key = jax.random.PRNGKey(0)
    k_x, k_w, k_b = jax.random.split(key, 3)

    B, Cin, Cout, H, W = 2, 4, 4, 16, 16

    x = jax.random.normal(k_x, (B, Cin, H, W), dtype=jnp.float32)
    # PyTorch ConvTranspose2d weight layout: (Cin, Cout, kH, kW).
    weight = jax.random.normal(k_w, (Cin, Cout, 2, 2), dtype=jnp.float32) * 0.1
    bias = jax.random.normal(k_b, (Cout,), dtype=jnp.float32) * 0.1

    out = upsampling_block(x, weight, bias)
    out = jax.block_until_ready(out)

    ref = _reference(x, weight, bias)
    assert out.shape == (B, Cout, 2 * H, 2 * W), out.shape
    assert jnp.allclose(out, ref, atol=1e-5, rtol=1e-5), float(jnp.max(jnp.abs(out - ref)))

    print("KERNEL_OK")
</pallas_src>

<mosaic_0001>
module attributes {stable_mosaic.version = 11 : i64} {
  func.func @_deconv_kernel(%arg0: i32, %arg1: i32, %arg2: memref<1x4x256xf32, #tpu.memory_space<vmem>>, %arg3: memref<16x4xf32, #tpu.memory_space<vmem>>, %arg4: memref<16x1xf32, #tpu.memory_space<vmem>>, %arg5: memref<1x16x256xf32, #tpu.memory_space<vmem>>) attributes {dimension_semantics = [#tpu.dimension_semantics<parallel>, #tpu.dimension_semantics<parallel>], iteration_bounds = array<i64: 2, 1>, scalar_prefetch = 0 : i64, scratch_operands = 0 : i64, tpu.core_type = #tpu.core_type<tc>, window_params = [{transform_indices = @transform_0, window_bounds = array<i64: 1, 4, 256>}, {pipeline_mode = #tpu.pipeline_mode<synchronous>, transform_indices = @transform_1, window_bounds = array<i64: 16, 4>}, {pipeline_mode = #tpu.pipeline_mode<synchronous>, transform_indices = @transform_2, window_bounds = array<i64: 16, 1>}, {transform_indices = @transform_3, window_bounds = array<i64: 1, 16, 256>}]} {
    %c0 = arith.constant 0 : index
    %c0_0 = arith.constant 0 : index
    %c0_1 = arith.constant 0 : index
    %0 = vector.load %arg2[%c0, %c0_0, %c0_1] : memref<1x4x256xf32, #tpu.memory_space<vmem>>, vector<1x4x256xf32>
    %1 = vector.shape_cast %0 : vector<1x4x256xf32> to vector<4x256xf32>
    %c0_2 = arith.constant 0 : index
    %c0_3 = arith.constant 0 : index
    %2 = vector.load %arg3[%c0_2, %c0_3] : memref<16x4xf32, #tpu.memory_space<vmem>>, vector<16x4xf32>
    %3 = vector.extract_strided_slice %2 {offsets = [0, 0], sizes = [16, 1], strides = [1, 1]} : vector<16x4xf32> to vector<16x1xf32>
    %4 = vector.extract_strided_slice %1 {offsets = [0, 0], sizes = [1, 256], strides = [1, 1]} : vector<4x256xf32> to vector<1x256xf32>
    %5 = vector.broadcast %3 : vector<16x1xf32> to vector<16x256xf32>
    %6 = vector.broadcast %4 : vector<1x256xf32> to vector<16x256xf32>
    %7 = arith.mulf %5, %6 : vector<16x256xf32>
    %8 = vector.extract_strided_slice %2 {offsets = [0, 1], sizes = [16, 1], strides = [1, 1]} : vector<16x4xf32> to vector<16x1xf32>
    %9 = vector.extract_strided_slice %1 {offsets = [1, 0], sizes = [1, 256], strides = [1, 1]} : vector<4x256xf32> to vector<1x256xf32>
    %10 = vector.broadcast %8 : vector<16x1xf32> to vector<16x256xf32>
    %11 = vector.broadcast %9 : vector<1x256xf32> to vector<16x256xf32>
    %12 = arith.mulf %10, %11 : vector<16x256xf32>
    %13 = arith.addf %7, %12 : vector<16x256xf32>
    %14 = vector.extract_strided_slice %2 {offsets = [0, 2], sizes = [16, 1], strides = [1, 1]} : vector<16x4xf32> to vector<16x1xf32>
    %15 = vector.extract_strided_slice %1 {offsets = [2, 0], sizes = [1, 256], strides = [1, 1]} : vector<4x256xf32> to vector<1x256xf32>
    %16 = vector.broadcast %14 : vector<16x1xf32> to vector<16x256xf32>
    %17 = vector.broadcast %15 : vector<1x256xf32> to vector<16x256xf32>
    %18 = arith.mulf %16, %17 : vector<16x256xf32>
    %19 = arith.addf %13, %18 : vector<16x256xf32>
    %20 = vector.extract_strided_slice %2 {offsets = [0, 3], sizes = [16, 1], strides = [1, 1]} : vector<16x4xf32> to vector<16x1xf32>
    %21 = vector.extract_strided_slice %1 {offsets = [3, 0], sizes = [1, 256], strides = [1, 1]} : vector<4x256xf32> to vector<1x256xf32>
    %22 = vector.broadcast %20 : vector<16x1xf32> to vector<16x256xf32>
    %23 = vector.broadcast %21 : vector<1x256xf32> to vector<16x256xf32>
    %24 = arith.mulf %22, %23 : vector<16x256xf32>
    %25 = arith.addf %19, %24 : vector<16x256xf32>
    %c0_4 = arith.constant 0 : index
    %c0_5 = arith.constant 0 : index
    %26 = vector.load %arg4[%c0_4, %c0_5] : memref<16x1xf32, #tpu.memory_space<vmem>>, vector<16x1xf32>
    %27 = vector.broadcast %26 : vector<16x1xf32> to vector<16x256xf32>
    %28 = arith.addf %25, %27 : vector<16x256xf32>
    %c0_6 = arith.constant 0 : index
    %c0_7 = arith.constant 0 : index
    %c0_8 = arith.constant 0 : index
    %29 = vector.load %arg5[%c0_6, %c0_7, %c0_8] : memref<1x16x256xf32, #tpu.memory_space<vmem>>, vector<1x16x256xf32>
    %30 = vector.shape_cast %29 : vector<1x16x256xf32> to vector<16x256xf32>
    %31 = vector.shape_cast %28 : vector<16x256xf32> to vector<1x16x256xf32>
    tpu.vector_store %arg5[%c0_6, %c0_7, %c0_8], %31 {strides = array<i32>} : memref<1x16x256xf32, #tpu.memory_space<vmem>>, vector<1x16x256xf32>,
    return
  }
  func.func @transform_0(%arg0: i32, %arg1: i32) -> (i32, i32, i32) {
    %c0_i32 = arith.constant 0 : i32
    %c0_i32_0 = arith.constant 0 : i32
    return %arg0, %c0_i32, %arg1 : i32, i32, i32
  }
  func.func @transform_1(%arg0: i32, %arg1: i32) -> (i32, i32) {
    %c0_i32 = arith.constant 0 : i32
    %c0_i32_0 = arith.constant 0 : i32
    %c0_i32_1 = arith.constant 0 : i32
    return %c0_i32, %c0_i32_0 : i32, i32
  }
  func.func @transform_2(%arg0: i32, %arg1: i32) -> (i32, i32) {
    %c0_i32 = arith.constant 0 : i32
    %c0_i32_0 = arith.constant 0 : i32
    %c0_i32_1 = arith.constant 0 : i32
    return %c0_i32, %c0_i32_0 : i32, i32
  }
  func.func @transform_3(%arg0: i32, %arg1: i32) -> (i32, i32, i32) {
    %c0_i32 = arith.constant 0 : i32
    %c0_i32_0 = arith.constant 0 : i32
    return %arg0, %c0_i32, %arg1 : i32, i32, i32
  }
}

</mosaic_0001>

<llo_original>
// kernel: upsampling_block.1
$region0: #{upsampling_block.1}
  #allocation0 [shape = 'u32[]', space=smem, size = 0x4, offset = 0x4, fixed_abs, tag = 'smem constant byte address 0x4 - core index']
  #allocation1 [shape = 'u32[144,128]{1,0:T(1,128)}', space=vmem, size = 0x12000, scoped, tag = 'internal scratch']
  %s0 = inlined_call_operand.vmem [shape: f32[2,4,256], index: 0, kind: input, shape index: {}]
  %s1 = inlined_call_operand.vmem [shape: f32[16,4], index: 1, kind: input, shape index: {}]
  %s2 = inlined_call_operand.vmem [shape: f32[16,1], index: 2, kind: input, shape index: {}]
  %s3 = inlined_call_operand.vmem [shape: f32[2,16,256], index: 3, kind: output, shape index: {}]
  %s4 = sld [smem:[#allocation0]]
  $region45: #{upsampling_block.1} parent=0
    _
  %s6 = ssub.s32 1, %s4
  %s7 = scalar_select 0, %s6, %s4
  loop: start=0, step=1, limit=4
  $region2: #{upsampling_block.1} parent=0 // loop_pre_header
    _
  $region3: #{upsampling_block.1} parent=0 // loop_header
    %s9 = sphi 0, %s13
    %p10 = scmp.ge.s32.totalorder %s9, 4
    %s16 = sphi 0, %s28
    %s17 = sphi 0, %s24
    %s18 = sphi 0, %s16
    %s19 = sphi 0, %s17
    %s20 = sphi 0, %s18
    %s21 = sphi 0, %s19
    %s33 = sphi 0, %s35
    %s36 = sphi 0, %s33
    %s37 = sphi 0, %s36
    %s53 = sphi 0, %s37
    %s57 = sphi 0, %s57
    %s59 = sphi 0, %s57
    %s60 = sphi 0, %s59
    %s74 = sphi 0, %s60
    %s78 = sphi 0, %s78
    %s80 = sphi 0, %s78
    %s81 = sphi 0, %s80
    %s95 = sphi 0, %s81
    %s103 = sphi 0, %s105
    %s106 = sphi 0, %s103
    %s107 = sphi 0, %s106
    %s123 = sphi 0, %s107
  $region4: #{upsampling_block.1} parent=0 // loop_header_branch
    %12 = sbr.rel (%p10) target = $region8
  $region5: #{upsampling_block.1} parent=0 // loop_body
    %s14 = ssub.s32 %s9, 1
    %s15 = ssub.s32 %s9, 2
    %s22 = sadd.s32 1, %s17
    %p23 = scmp.ge.s32.totalorder %s22, 1
    %s24 = scalar_select %p23, 0, %s22
    %s25 = sadd.s32 1, %s16
    %s26 = scalar_select %p23, %s25, %s16
    %p27 = scmp.ge.s32.totalorder %s26, 2
    %s28 = scalar_select %p27, 0, %s26
    %s29 = ssub.s32 %s16, %s28
    %s30 = ssub.s32 %s17, %s24
    %s31 = sor.u32 %s29, %s30
    %p32 = scmp.eq.s32.totalorder %s31, 0
    %s34 = sadd.s32 %s33, 1
    %s35 = scalar_select %p32, %s33, %s34
    %p38 = pneg %p32
    %p39 = scmp.eq.s32.totalorder %s9, 1
    %p40 = por %p38, %p39
    %p41 = scmp.ne.s32.totalorder %s33, %s36
    %p42 = scmp.eq.s32.totalorder %s9, 0
    %p43 = por %p41, %p42
    %p44 = scmp.ne.s32.totalorder %s33, %s36
    %p45 = scmp.eq.s32.totalorder %s14, 1
    %p46 = por %p44, %p45
    %p47 = scmp.ne.s32.totalorder %s36, %s37
    %p48 = scmp.eq.s32.totalorder %s14, 0
    %p49 = por %p47, %p48
    %p50 = scmp.ne.s32.totalorder %s36, %s37
    %p51 = scmp.eq.s32.totalorder %s15, 1
    %p52 = por %p50, %p51
    %p54 = scmp.ne.s32.totalorder %s37, %s53
    %p55 = scmp.eq.s32.totalorder %s15, 0
    %p56 = por %p54, %p55
    %s58 = sadd.s32 %s57, 1
    %p61 = scmp.eq.s32.totalorder %s9, 1
    %p62 = scmp.ne.s32.totalorder %s57, %s59
    %p63 = scmp.eq.s32.totalorder %s9, 0
    %p64 = por %p62, %p63
    %p65 = scmp.ne.s32.totalorder %s57, %s59
    %p66 = scmp.eq.s32.totalorder %s14, 1
    %p67 = por %p65, %p66
    %p68 = scmp.ne.s32.totalorder %s59, %s60
    %p69 = scmp.eq.s32.totalorder %s14, 0
    %p70 = por %p68, %p69
    %p71 = scmp.ne.s32.totalorder %s59, %s60
    %p72 = scmp.eq.s32.totalorder %s15, 1
    %p73 = por %p71, %p72
    %p75 = scmp.ne.s32.totalorder %s60, %s74
    %p76 = scmp.eq.s32.totalorder %s15, 0
    %p77 = por %p75, %p76
    %s79 = sadd.s32 %s78, 1
    %p82 = scmp.eq.s32.totalorder %s9, 1
    %p83 = scmp.ne.s32.totalorder %s78, %s80
    %p84 = scmp.eq.s32.totalorder %s9, 0
    %p85 = por %p83, %p84
    %p86 = scmp.ne.s32.totalorder %s78, %s80
    %p87 = scmp.eq.s32.totalorder %s14, 1
    %p88 = por %p86, %p87
    %p89 = scmp.ne.s32.totalorder %s80, %s81
    %p90 = scmp.eq.s32.totalorder %s14, 0
    %p91 = por %p89, %p90
    %p92 = scmp.ne.s32.totalorder %s80, %s81
    %p93 = scmp.eq.s32.totalorder %s15, 1
    %p94 = por %p92, %p93
    %p96 = scmp.ne.s32.totalorder %s81, %s95
    %p97 = scmp.eq.s32.totalorder %s15, 0
    %p98 = por %p96, %p97
    %s99 = ssub.s32 %s16, %s28
    %s100 = ssub.s32 %s17, %s24
    %s101 = sor.u32 %s99, %s100
    %p102 = scmp.eq.s32.totalorder %s101, 0
    %s104 = sadd.s32 %s103, 1
    %s105 = scalar_select %p102, %s103, %s104
    %p108 = pneg %p102
    %p109 = scmp.eq.s32.totalorder %s9, 1
    %p110 = por %p108, %p109
    %p111 = scmp.ne.s32.totalorder %s103, %s106
    %p112 = scmp.eq.s32.totalorder %s9, 0
    %p113 = por %p111, %p112
    %p114 = scmp.ne.s32.totalorder %s103, %s106
    %p115 = scmp.eq.s32.totalorder %s14, 1
    %p116 = por %p114, %p115
    %p117 = scmp.ne.s32.totalorder %s106, %s107
    %p118 = scmp.eq.s32.totalorder %s14, 0
    %p119 = por %p117, %p118
    %p120 = scmp.ne.s32.totalorder %s106, %s107
    %p121 = scmp.eq.s32.totalorder %s15, 1
    %p122 = por %p120, %p121
    %p124 = scmp.ne.s32.totalorder %s107, %s123
    %p125 = scmp.eq.s32.totalorder %s15, 0
    %p126 = por %p124, %p125
    %p127 = scmp.le.s32.totalorder 1, %s9
    %p128 = scmp.lt.s32.totalorder %s9, 3
    %p129 = pnand %p127, %p128
    %p130 = pneg %p129
    // Predicated region
    $region9: #{upsampling_block.1} parent=5 // pred_check
      _
    $region10: #{upsampling_block.1} parent=5 // pred_check_branch
      %132 = sbr.rel (%p129) target = $region12
    $region11: #{upsampling_block.1} parent=5 // pred_region
      %s133 = ssub.s32 %s9, 1
      // Predicated region
      $region13: #{upsampling_block.1} parent=11 // pred_check
        %p134 = pneg %p70
      $region14: #{upsampling_block.1} parent=11 // pred_check_branch
        %136 = sbr.rel (%p134) target = $region16
      $region15: #{upsampling_block.1} parent=11 // pred_region
        _
      $region16: #{upsampling_block.1} parent=11 // pred_fallthru
        _
      // Predicated region
      $region17: #{upsampling_block.1} parent=11 // pred_check
        %p137 = pneg %p91
      $region18: #{upsampling_block.1} parent=11 // pred_check_branch
        %139 = sbr.rel (%p137) target = $region20
      $region19: #{upsampling_block.1} parent=11 // pred_region
        _
      $region20: #{upsampling_block.1} parent=11 // pred_fallthru
        _
    $region12: #{upsampling_block.1} parent=5 // pred_fallthru
      _
    %p140 = scmp.lt.s32.totalorder %s9, 2
    // Predicated region
    $region21: #{upsampling_block.1} parent=5 // pred_check
      %p141 = pneg %p140
    $region22: #{upsampling_block.1} parent=5 // pred_check_branch
      %143 = sbr.rel (%p141) target = $region24
    $region23: #{upsampling_block.1} parent=5 // pred_region
      // Predicated region
      $region25: #{upsampling_block.1} parent=23 // pred_check
        %p144 = pneg %p43
      $region26: #{upsampling_block.1} parent=23 // pred_check_branch
        %146 = sbr.rel (%p144) target = $region28
      $region27: #{upsampling_block.1} parent=23 // pred_region
        %s147 = smul.u32 2, %s17
        %p148 = scmp.lt.s32.totalorder %s16, 1
        %s149 = scalar_select %p148, %s16, 1
        %p150 = scmp.lt.s32.totalorder %s147, 1
        %s151 = scalar_select %p150, %s147, 1
        %s152 = smul.addr %s149, 2
        %s153 = sadd.s32 %s151, %s152
        %s154 = smul.addr %s153, 4
        %s155 = scalar_lea.vmem %s0, %s154
        %s156 = smul.u32 2, %s17
      $region28: #{upsampling_block.1} parent=23 // pred_fallthru
        _
    $region24: #{upsampling_block.1} parent=5 // pred_fallthru
      _
    %p157 = scmp.le.s32.totalorder 1, %s9
    %p158 = scmp.lt.s32.totalorder %s9, 3
    %p159 = pnand %p157, %p158
    %p160 = pneg %p159
    // Predicated region
    $region29: #{upsampling_block.1} parent=5 // pred_check
      _
    $region30: #{upsampling_block.1} parent=5 // pred_check_branch
      %162 = sbr.rel (%p159) target = $region32
    $region31: #{upsampling_block.1} parent=5 // pred_region
      %s163 = ssub.s32 %s9, 1
      %s164 = smul.u32 2, %s19
      %p165 = scmp.lt.s32.totalorder %s18, 1
      %s166 = scalar_select %p165, %s18, 1
      %p167 = scmp.lt.s32.totalorder %s164, 1
      %s168 = scalar_select %p167, %s164, 1
      %s169 = smul.addr %s166, 2
      %s170 = sadd.s32 %s168, %s169
      %s171 = smul.addr %s170, 4
      %s172 = scalar_lea.vmem %s0, %s171
      %p173 = pneg %p49
      %p174 = pneg %p46
      %p175 = pneg %p70
      %p176 = pneg %p67
      %p177 = pneg %p91
      %p178 = pneg %p88
      %p179 = pneg %p119
      %p180 = pneg %p116
      %s181 = smul.u32 2, %s19
      %p182 = scmp.lt.s32.totalorder %s18, 1
      %s183 = scalar_select %p182, %s18, 1
      %p184 = scmp.lt.s32.totalorder %s181, 1
      %s185 = scalar_select %p184, %s181, 1
      %s186 = smul.addr %s183, 4
      %s187 = sadd.s32 %s185, %s186
      %s188 = smul.addr %s187, 8
      %s189 = scalar_lea.vmem %s3, %s188
      %s190 = smul.u32 2, %s19
      %p191 = scmp.lt.s32.totalorder %s18, 1
      %s192 = scalar_select %p191, %s18, 1
      %p193 = scmp.lt.s32.totalorder %s190, 1
      %s194 = scalar_select %p193, %s190, 1
      %s195 = smul.addr %s192, 2
      %s196 = sadd.s32 %s194, %s195
      %s197 = smul.addr %s196, 4
      %s198 = scalar_lea.vmem %s0, %s197
      %s199 = smul.u32 2, %s19
      %s200 = smul.u32 2, %s19
      %p201 = scmp.lt.s32.totalorder %s18, 1
      %s202 = scalar_select %p201, %s18, 1
      %p203 = scmp.lt.s32.totalorder %s200, 1
      %s204 = scalar_select %p203, %s200, 1
      %s205 = smul.addr %s202, 4
      %s206 = sadd.s32 %s204, %s205
      %s207 = smul.addr %s206, 8
      %s208 = scalar_lea.vmem %s3, %s207
      %s209 = smul.u32 2, %s19
      %v210 = vld [vmem:[%s198] sm:$0xff]
      %v211 = vld [vmem:[%s1] sm:$0xff]
      %v212 = vld [vmem:[%s1 + $0x8] sm:$0xff]
      %214 = vset.pattern.permute.xlu0 0
      %215 = vperm.xlu0 %214, %v211
      %v216 = vpop.permute.xlu0 %215
      %219 = vset.pattern.permute.xlu0 0
      %220 = vperm.xlu0 %219, %v212
      %v221 = vpop.permute.xlu0 %220
      %v224 = vlaneseq
      %v225 = vshrl.u32 %v224, 7
      %v226 = vsub.s32 0, %v225
      %v227 = vrot.slane %v210, %v226
      %v228 = vlaneseq
      %v229 = vshrl.u32 %v228, 7
      %v230 = vsub.s32 4, %v229
      %v231 = vrot.slane %v210, %v230
      %v234 = vlaneseq
      %v235 = vshrl.u32 %v234, 7
      %v236 = vsub.s32 0, %v235
      %v237 = vrot.slane %v227, %v236
      %v238 = vlaneseq
      %v239 = vshrl.u32 %v238, 7
      %v240 = vsub.s32 0, %v239
      %v241 = vrot.slane %v231, %v240
      %v242 = vmul.f32 %v216, %v237
      %v243 = vmul.f32 %v216, %v241
      %v244 = vmul.f32 %v221, %v237
      %v245 = vmul.f32 %v221, %v241
      %246 = vset.pattern.permute.xlu0 1
      %247 = vperm.xlu0 %246, %v211
      %v248 = vpop.permute.xlu0 %247
      %250 = vset.pattern.permute.xlu0 1
      %251 = vperm.xlu0 %250, %v212
      %v252 = vpop.permute.xlu0 %251
      %v254 = vlaneseq
      %v255 = vshrl.u32 %v254, 7
      %v256 = vsub.s32 1, %v255
      %v257 = vrot.slane %v210, %v256
      %v258 = vlaneseq
      %v259 = vshrl.u32 %v258, 7
      %v260 = vsub.s32 5, %v259
      %v261 = vrot.slane %v210, %v260
      %v264 = vlaneseq
      %v265 = vshrl.u32 %v264, 7
      %v266 = vsub.s32 1, %v265
      %v267 = vrot.slane %v257, %v266
      %v268 = vlaneseq
      %v269 = vshrl.u32 %v268, 7
      %v270 = vsub.s32 1, %v269
      %v271 = vrot.slane %v261, %v270
      %v272 = vmul.f32 %v248, %v267
      %v273 = vmul.f32 %v248, %v271
      %v274 = vmul.f32 %v252, %v267
      %v275 = vmul.f32 %v252, %v271
      %v276 = vadd.f32 %v242, %v272
      %v277 = vadd.f32 %v243, %v273
      %v278 = vadd.f32 %v244, %v274
      %v279 = vadd.f32 %v245, %v275
      %280 = vset.pattern.permute.xlu0 2
      %281 = vperm.xlu0 %280, %v211
      %v282 = vpop.permute.xlu0 %281
      %284 = vset.pattern.permute.xlu0 2
      %285 = vperm.xlu0 %284, %v212
      %v286 = vpop.permute.xlu0 %285
      %v288 = vlaneseq
      %v289 = vshrl.u32 %v288, 7
      %v290 = vsub.s32 2, %v289
      %v291 = vrot.slane %v210, %v290
      %v292 = vlaneseq
      %v293 = vshrl.u32 %v292, 7
      %v294 = vsub.s32 6, %v293
      %v295 = vrot.slane %v210, %v294
      %v298 = vlaneseq
      %v299 = vshrl.u32 %v298, 7
      %v300 = vsub.s32 2, %v299
      %v301 = vrot.slane %v291, %v300
      %v302 = vlaneseq
      %v303 = vshrl.u32 %v302, 7
      %v304 = vsub.s32 2, %v303
      %v305 = vrot.slane %v295, %v304
      %v306 = vmul.f32 %v282, %v301
      %v307 = vmul.f32 %v282, %v305
      %v308 = vmul.f32 %v286, %v301
      %v309 = vmul.f32 %v286, %v305
      %v310 = vadd.f32 %v276, %v306
      %v311 = vadd.f32 %v277, %v307
      %v312 = vadd.f32 %v278, %v308
      %v313 = vadd.f32 %v279, %v309
      %314 = vset.pattern.permute.xlu0 3
      %315 = vperm.xlu0 %314, %v211
      %v316 = vpop.permute.xlu0 %315
      %318 = vset.pattern.permute.xlu0 3
      %319 = vperm.xlu0 %318, %v212
      %v320 = vpop.permute.xlu0 %319
      %v322 = vlaneseq
      %v323 = vshrl.u32 %v322, 7
      %v324 = vsub.s32 3, %v323
      %v325 = vrot.slane %v210, %v324
      %v326 = vlaneseq
      %v327 = vshrl.u32 %v326, 7
      %v328 = vsub.s32 7, %v327
      %v329 = vrot.slane %v210, %v328
      %v332 = vlaneseq
      %v333 = vshrl.u32 %v332, 7
      %v334 = vsub.s32 3, %v333
      %v335 = vrot.slane %v325, %v334
      %v336 = vlaneseq
      %v337 = vshrl.u32 %v336, 7
      %v338 = vsub.s32 3, %v337
      %v339 = vrot.slane %v329, %v338
      %v340 = vmul.f32 %v316, %v335
      %v341 = vmul.f32 %v316, %v339
      %v342 = vmul.f32 %v320, %v335
      %v343 = vmul.f32 %v320, %v339
      %v344 = vadd.f32 %v310, %v340
      %v345 = vadd.f32 %v311, %v341
      %v346 = vadd.f32 %v312, %v342
      %v347 = vadd.f32 %v313, %v343
      %v348 = vld [vmem:[%s2] sm:$0xff]
      %v349 = vld [vmem:[%s2 + $0x8] sm:$0xff]
      %351 = vset.pattern.permute.xlu0 0
      %352 = vperm.xlu0 %351, %v348
      %v353 = vpop.permute.xlu0 %352
      %356 = vset.pattern.permute.xlu0 0
      %357 = vperm.xlu0 %356, %v349
      %v358 = vpop.permute.xlu0 %357
      %v360 = vadd.f32 %v344, %v353
      %v361 = vadd.f32 %v345, %v353
      %v362 = vadd.f32 %v346, %v358
      %v363 = vadd.f32 %v347, %v358
      %364 = vst [vmem:[%s208] sm:$0xff] %v360
      %365 = vst [vmem:[%s208 + $0x8] sm:$0xff] %v361
      %366 = vst [vmem:[%s208 + $0x10] sm:$0xff] %v362
      %367 = vst [vmem:[%s208 + $0x18] sm:$0xff] %v363
      %s368 = smul.u32 2, %s19
      %p369 = scmp.lt.s32.totalorder %s18, 1
      %s370 = scalar_select %p369, %s18, 1
      %p371 = scmp.lt.s32.totalorder %s368, 1
      %s372 = scalar_select %p371, %s368, 1
      %s373 = smul.addr %s370, 4
      %s374 = sadd.s32 %s372, %s373
      %s375 = smul.addr %s374, 8
      %s376 = scalar_lea.vmem %s3, %s375
      // Predicated region
      $region33: #{upsampling_block.1} parent=31 // pred_check
        %p377 = pneg %p116
      $region34: #{upsampling_block.1} parent=31 // pred_check_branch
        %379 = sbr.rel (%p377) target = $region36
      $region35: #{upsampling_block.1} parent=31 // pred_region
        %s380 = smul.u32 2, %s19
      $region36: #{upsampling_block.1} parent=31 // pred_fallthru
        _
    $region32: #{upsampling_block.1} parent=5 // pred_fallthru
      _
    %p381 = scmp.le.s32.totalorder 2, %s9
    // Predicated region
    $region37: #{upsampling_block.1} parent=5 // pred_check
      %p382 = pneg %p381
    $region38: #{upsampling_block.1} parent=5 // pred_check_branch
      %384 = sbr.rel (%p382) target = $region40
    $region39: #{upsampling_block.1} parent=5 // pred_region
      %s385 = ssub.s32 %s9, 2
      // Predicated region
      $region41: #{upsampling_block.1} parent=39 // pred_check
        %p386 = pneg %p122
      $region42: #{upsampling_block.1} parent=39 // pred_check_branch
        %388 = sbr.rel (%p386) target = $region44
      $region43: #{upsampling_block.1} parent=39 // pred_region
        %s389 = smul.u32 2, %s21
        %p390 = scmp.lt.s32.totalorder %s20, 1
        %s391 = scalar_select %p390, %s20, 1
        %p392 = scmp.lt.s32.totalorder %s389, 1
        %s393 = scalar_select %p392, %s389, 1
        %s394 = smul.addr %s391, 4
        %s395 = sadd.s32 %s393, %s394
        %s396 = smul.addr %s395, 8
        %s397 = scalar_lea.vmem %s3, %s396
      $region44: #{upsampling_block.1} parent=39 // pred_fallthru
        _
    $region40: #{upsampling_block.1} parent=5 // pred_fallthru
      _
  $region6: #{upsampling_block.1} parent=0 // loop_footer
    %s13 = sadd.s32 1, %s9
  $region7: #{upsampling_block.1} parent=0 // loop_footer_branch
    %8 = sbr.rel target = $region3
  $region8: #{upsampling_block.1} parent=0 // loop_exit
    _

</llo_original>
